<compile_context>
chip_gen: v7x
topology: tpu7x:2x2x1
jax: 0.10.0
libtpu: 0.0.40
codegen_flags: <defaults>
</compile_context>

<pallas_src>
import jax
import jax.numpy as jnp
from jax.experimental import pallas as pl
from jax.experimental.pallas import tpu as pltpu


# ----------------------------------------------------------------------------
# Kernels
# ----------------------------------------------------------------------------

def _affine_fma(w, b, h):
    """y = w @ h + b computed as unrolled VPU outer-product FMAs.

    w: [out, k] (PyTorch nn.Linear layout), b: [out, 1], h: [k, TN] -> [out, TN].
    k/out are 2/9/12 here, so broadcast FMAs on the VALU beat an MXU push/pop.
    """
    k_dim = h.shape[0]
    acc = w[:, 0:1] * h[0:1, :] + b
    for k in range(1, k_dim):
        acc = acc + w[:, k:k + 1] * h[k:k + 1, :]
    return acc


def _inr_kernel(xT_ref, w1_ref, b1_ref, w2_ref, b2_ref, w3_ref, b3_ref, o_ref):
    # xT_ref: [in_f, TN] (samples on lanes); o_ref: [C, TN]
    h1 = jnp.sin(_affine_fma(w1_ref[...], b1_ref[...], xT_ref[...]))   # [H, TN]
    h2 = jnp.sin(_affine_fma(w2_ref[...], b2_ref[...], h1))            # [H, TN]
    y = _affine_fma(w3_ref[...], b3_ref[...], h2)                      # [C, TN]
    o_ref[...] = y.astype(o_ref.dtype)


def _inr_banked_kernel(xT_ref, w1_ref, b1_ref, w2_ref, b2_ref, w3_ref, b3_ref,
                       o_ref):
    # Same math, weights carry a leading per-bank dim of size 1.
    h1 = jnp.sin(_affine_fma(w1_ref[0], b1_ref[0], xT_ref[...]))
    h2 = jnp.sin(_affine_fma(w2_ref[0], b2_ref[0], h1))
    y = _affine_fma(w3_ref[0], b3_ref[0], h2)
    o_ref[0] = y.astype(o_ref.dtype)


# ----------------------------------------------------------------------------
# Wrappers
# ----------------------------------------------------------------------------

def _pick_tile(n, tile_n, in_f, c, *, want_two_steps=True):
    """Pick a 128-aligned lane tile that fits VMEM; never trust caller's tile_n."""
    n128 = pl.cdiv(n, 128) * 128
    tile = max(128, (min(int(tile_n), n128) // 128) * 128)
    # Keep double-buffered in+out row blocks well inside the 32 MiB scoped VMEM
    # default (and v7x's 64 MiB physical VMEM).
    vmem_budget = 24 << 20
    max_tile = max(128, (vmem_budget // (2 * 4 * (in_f + c)) // 128) * 128)
    tile = min(tile, max_tile)
    # Give v7x's two TensorCores >= 2 grid steps to shard when possible.
    if want_two_steps and n128 >= 256 and pl.cdiv(n, tile) < 2:
        tile = max(128, ((n128 // 2) // 128) * 128)
    return tile


def in_filter_bank_forward(x, params, in_channels, out_channels, *,
                           tile_n=16384, out_dtype=jnp.float32,
                           layout="module"):
    """Pallas forward of INFilterBank.

    x:      [N, in_features] float32
    params: PyTorch-layout weights: w1 [H, in_f], b1 [H, 1], w2 [H, H],
            b2 [H, 1], w3 [C, H], b3 [C, 1]  (C = in_channels*out_channels)
    layout: "module"         -> [N, out_channels, in_channels]  (matches torch)
            "channels_major" -> [out_channels, in_channels, N]  (no transpose copy)
    """
    N, in_f = x.shape
    H = params["w1"].shape[0]
    C = params["w3"].shape[0]
    assert C == in_channels * out_channels

    tile = _pick_tile(N, tile_n, in_f, C)
    n_pad = pl.cdiv(N, tile) * tile
    xT = jnp.pad(x, ((0, n_pad - N), (0, 0))).T          # [in_f, n_pad], N on lanes

    full = lambda shape: pl.BlockSpec(shape, lambda i: (0, 0))

    out_isize = jnp.dtype(out_dtype).itemsize
    flops = 2 * n_pad * (in_f * H + H * H + H * C)
    transcendentals = 2 * n_pad * H
    bytes_accessed = int(4 * (n_pad * in_f + in_f * H + H * H + H * C + 2 * H + C)
                         + n_pad * C * out_isize)
    block_bytes = 4 * tile * in_f + out_isize * tile * C
    vmem_limit = int(min(64 << 20, max(32 << 20, 4 * block_bytes)))

    yT = pl.pallas_call(
        _inr_kernel,
        out_shape=jax.ShapeDtypeStruct((C, n_pad), out_dtype),
        grid_spec=pltpu.PrefetchScalarGridSpec(
            num_scalar_prefetch=0,
            grid=(n_pad // tile,),
            in_specs=[
                pl.BlockSpec((in_f, tile), lambda i: (0, i)),   # xT row tile
                full((H, in_f)),                                # w1
                full((H, 1)),                                   # b1
                full((H, H)),                                   # w2
                full((H, 1)),                                   # b2
                full((C, H)),                                   # w3
                full((C, 1)),                                   # b3
            ],
            out_specs=pl.BlockSpec((C, tile), lambda i: (0, i)),
        ),
        compiler_params=pltpu.CompilerParams(
            dimension_semantics=("parallel",),
            vmem_limit_bytes=vmem_limit,
        ),
        cost_estimate=pl.CostEstimate(
            flops=flops,
            transcendentals=transcendentals,
            bytes_accessed=bytes_accessed,
        ),
    )(
        xT,
        params["w1"], params["b1"],
        params["w2"], params["b2"],
        params["w3"], params["b3"],
    )

    if layout == "channels_major":
        # Kernel-native [C, N] result; (out, in, N) reshape is free (no copy).
        return yT[:, :N].reshape(out_channels, in_channels, N)

    # Module-exact layout (a single [C,N]->[N,C] transpose copy; consumers that
    # can take channels_major avoid it entirely).
    y = yT.T[:N]                                          # [N, C]
    return y.reshape(-1, out_channels, in_channels)


def in_filter_bank_forward_banked(x, stacked_params, in_channels, out_channels, *,
                                  tile_n=16384, out_dtype=jnp.float32):
    """Run G independent filter banks (stacked weight sets) in ONE pallas_call.

    x:              [N, in_features] shared coordinate grid
    stacked_params: w1 [G,H,in_f], b1 [G,H,1], w2 [G,H,H], b2 [G,H,1],
                    w3 [G,C,H],    b3 [G,C,1]
    returns         [G, N, out_channels, in_channels]
    """
    N, in_f = x.shape
    G, H, _ = stacked_params["w1"].shape
    C = stacked_params["w3"].shape[1]
    assert C == in_channels * out_channels

    tile = _pick_tile(N, tile_n, in_f, C, want_two_steps=False)
    n_pad = pl.cdiv(N, tile) * tile
    xT = jnp.pad(x, ((0, n_pad - N), (0, 0))).T           # [in_f, n_pad]

    per_bank = lambda shape: pl.BlockSpec((1,) + shape, lambda g, i: (g, 0, 0))

    out_isize = jnp.dtype(out_dtype).itemsize
    flops = 2 * G * n_pad * (in_f * H + H * H + H * C)
    transcendentals = 2 * G * n_pad * H
    bytes_accessed = int(4 * G * (n_pad * in_f + in_f * H + H * H + H * C + 2 * H + C)
                         + G * n_pad * C * out_isize)
    block_bytes = 4 * tile * in_f + out_isize * tile * C
    vmem_limit = int(min(64 << 20, max(32 << 20, 4 * block_bytes)))

    yT = pl.pallas_call(
        _inr_banked_kernel,
        out_shape=jax.ShapeDtypeStruct((G, C, n_pad), out_dtype),
        grid_spec=pltpu.PrefetchScalarGridSpec(
            num_scalar_prefetch=0,
            grid=(G, n_pad // tile),
            in_specs=[
                pl.BlockSpec((in_f, tile), lambda g, i: (0, i)),  # shared coords
                per_bank((H, in_f)),                              # w1
                per_bank((H, 1)),                                 # b1
                per_bank((H, H)),                                 # w2
                per_bank((H, 1)),                                 # b2
                per_bank((C, H)),                                 # w3
                per_bank((C, 1)),                                 # b3
            ],
            out_specs=pl.BlockSpec((1, C, tile), lambda g, i: (g, 0, i)),
        ),
        compiler_params=pltpu.CompilerParams(
            dimension_semantics=("parallel", "parallel"),
            vmem_limit_bytes=vmem_limit,
        ),
        cost_estimate=pl.CostEstimate(
            flops=flops,
            transcendentals=transcendentals,
            bytes_accessed=bytes_accessed,
        ),
    )(
        xT,
        stacked_params["w1"], stacked_params["b1"],
        stacked_params["w2"], stacked_params["b2"],
        stacked_params["w3"], stacked_params["b3"],
    )

    y = jnp.swapaxes(yT[:, :, :N], 1, 2)                  # [G, N, C]
    return y.reshape(G, -1, out_channels, in_channels)


# ----------------------------------------------------------------------------
# Init / reference
# ----------------------------------------------------------------------------

def init_params(key, in_features, hidden_size, out_features):
    """Deterministic init matching nn.Linear (PyTorch [out, in] weight layout)."""
    ks = jax.random.split(key, 6)

    def linear(kw, kb, fan_in, fan_out):
        bound = 1.0 / jnp.sqrt(jnp.float32(fan_in))
        w = jax.random.uniform(kw, (fan_out, fan_in), jnp.float32, -bound, bound)
        b = jax.random.uniform(kb, (fan_out, 1), jnp.float32, -bound, bound)
        return w, b

    w1, b1 = linear(ks[0], ks[1], in_features, hidden_size)
    w2, b2 = linear(ks[2], ks[3], hidden_size, hidden_size)
    w3, b3 = linear(ks[4], ks[5], hidden_size, out_features)
    return dict(w1=w1, b1=b1, w2=w2, b2=b2, w3=w3, b3=b3)


def _reference(x, p, in_channels, out_channels):
    h1 = jnp.sin(x @ p["w1"].T + p["b1"].T)
    h2 = jnp.sin(h1 @ p["w2"].T + p["b2"].T)
    y = h2 @ p["w3"].T + p["b3"].T
    return y.reshape(-1, out_channels, in_channels)


# ----------------------------------------------------------------------------
# Smoke test
# ----------------------------------------------------------------------------

if __name__ == "__main__":
    # Module-consistent small shapes:
    #   in_channels=4, out_channels=3, in_features=2, hidden_size=9
    in_channels, out_channels = 4, 3
    in_features, hidden_size = 2, 9
    out_features = in_channels * out_channels

    key = jax.random.PRNGKey(0)
    k_x, k_x2, k_p, k_banks = jax.random.split(key, 4)

    # 1) Module-natural tiny case: N=16 2-D coordinates.
    N = 16
    x = jax.random.uniform(k_x, (N, in_features), jnp.float32, -1.0, 1.0)
    params = init_params(k_p, in_features, hidden_size, out_features)

    out = jax.block_until_ready(
        in_filter_bank_forward(x, params, in_channels, out_channels))
    ref = _reference(x, params, in_channels, out_channels)
    assert out.shape == (N, out_channels, in_channels), out.shape
    assert jnp.allclose(out, ref, atol=1e-5, rtol=1e-5), "mismatch vs reference"

    # 1b) Transpose-free channels_major output path.
    out_cm = jax.block_until_ready(
        in_filter_bank_forward(x, params, in_channels, out_channels,
                               layout="channels_major"))
    assert out_cm.shape == (out_channels, in_channels, N), out_cm.shape
    assert jnp.allclose(out_cm, jnp.transpose(ref, (1, 2, 0)),
                        atol=1e-5, rtol=1e-5), "channels_major mismatch"

    # 2) Non-multiple N exercising padding and a multi-step grid (>= 2 steps).
    N2 = 300
    x2 = jax.random.uniform(k_x2, (N2, in_features), jnp.float32, -1.0, 1.0)
    out2 = jax.block_until_ready(
        in_filter_bank_forward(x2, params, in_channels, out_channels))
    ref2 = _reference(x2, params, in_channels, out_channels)
    assert out2.shape == (N2, out_channels, in_channels), out2.shape
    assert jnp.allclose(out2, ref2, atol=1e-5, rtol=1e-5), "padded-N mismatch"

    # 3) Batched filter banks: G weight sets in one pallas_call.
    G = 4
    bank_keys = jax.random.split(k_banks, G)
    bank_params = [init_params(k, in_features, hidden_size, out_features)
                   for k in bank_keys]
    stacked = {name: jnp.stack([p[name] for p in bank_params])
               for name in bank_params[0]}
    out_b = jax.block_until_ready(
        in_filter_bank_forward_banked(x, stacked, in_channels, out_channels))
    assert out_b.shape == (G, N, out_channels, in_channels), out_b.shape
    for g in range(G):
        refg = _reference(x, bank_params[g], in_channels, out_channels)
        assert jnp.allclose(out_b[g], refg, atol=1e-5, rtol=1e-5), f"bank {g} mismatch"

    print("KERNEL_OK")
</pallas_src>

<mosaic_0001>
module attributes {stable_mosaic.version = 11 : i64} {
  func.func @_inr_kernel(%arg0: i32, %arg1: memref<2x128xf32, #tpu.memory_space<vmem>>, %arg2: memref<9x2xf32, #tpu.memory_space<vmem>>, %arg3: memref<9x1xf32, #tpu.memory_space<vmem>>, %arg4: memref<9x9xf32, #tpu.memory_space<vmem>>, %arg5: memref<9x1xf32, #tpu.memory_space<vmem>>, %arg6: memref<12x9xf32, #tpu.memory_space<vmem>>, %arg7: memref<12x1xf32, #tpu.memory_space<vmem>>, %arg8: memref<12x128xf32, #tpu.memory_space<vmem>>) attributes {dimension_semantics = [#tpu.dimension_semantics<parallel>], iteration_bounds = array<i64: 1>, scalar_prefetch = 0 : i64, scratch_operands = 0 : i64, tpu.core_type = #tpu.core_type<tc>, window_params = [{transform_indices = @transform_0, window_bounds = array<i64: 2, 128>}, {pipeline_mode = #tpu.pipeline_mode<synchronous>, transform_indices = @transform_1, window_bounds = array<i64: 9, 2>}, {pipeline_mode = #tpu.pipeline_mode<synchronous>, transform_indices = @transform_2, window_bounds = array<i64: 9, 1>}, {pipeline_mode = #tpu.pipeline_mode<synchronous>, transform_indices = @transform_3, window_bounds = array<i64: 9, 9>}, {pipeline_mode = #tpu.pipeline_mode<synchronous>, transform_indices = @transform_4, window_bounds = array<i64: 9, 1>}, {pipeline_mode = #tpu.pipeline_mode<synchronous>, transform_indices = @transform_5, window_bounds = array<i64: 12, 9>}, {pipeline_mode = #tpu.pipeline_mode<synchronous>, transform_indices = @transform_6, window_bounds = array<i64: 12, 1>}, {transform_indices = @transform_7, window_bounds = array<i64: 12, 128>}]} {
    %c0 = arith.constant 0 : index
    %c0_0 = arith.constant 0 : index
    %0 = vector.load %arg2[%c0, %c0_0] : memref<9x2xf32, #tpu.memory_space<vmem>>, vector<9x2xf32>
    %c0_1 = arith.constant 0 : index
    %c0_2 = arith.constant 0 : index
    %1 = vector.load %arg3[%c0_1, %c0_2] : memref<9x1xf32, #tpu.memory_space<vmem>>, vector<9x1xf32>
    %c0_3 = arith.constant 0 : index
    %c0_4 = arith.constant 0 : index
    %2 = vector.load %arg1[%c0_3, %c0_4] : memref<2x128xf32, #tpu.memory_space<vmem>>, vector<2x128xf32>
    %3 = vector.extract_strided_slice %0 {offsets = [0, 0], sizes = [9, 1], strides = [1, 1]} : vector<9x2xf32> to vector<9x1xf32>
    %4 = vector.extract_strided_slice %2 {offsets = [0, 0], sizes = [1, 128], strides = [1, 1]} : vector<2x128xf32> to vector<1x128xf32>
    %5 = vector.broadcast %3 : vector<9x1xf32> to vector<9x128xf32>
    %6 = vector.broadcast %4 : vector<1x128xf32> to vector<9x128xf32>
    %7 = arith.mulf %5, %6 : vector<9x128xf32>
    %8 = vector.broadcast %1 : vector<9x1xf32> to vector<9x128xf32>
    %9 = arith.addf %7, %8 : vector<9x128xf32>
    %10 = vector.extract_strided_slice %0 {offsets = [0, 1], sizes = [9, 1], strides = [1, 1]} : vector<9x2xf32> to vector<9x1xf32>
    %11 = vector.extract_strided_slice %2 {offsets = [1, 0], sizes = [1, 128], strides = [1, 1]} : vector<2x128xf32> to vector<1x128xf32>
    %12 = vector.broadcast %10 : vector<9x1xf32> to vector<9x128xf32>
    %13 = vector.broadcast %11 : vector<1x128xf32> to vector<9x128xf32>
    %14 = arith.mulf %12, %13 : vector<9x128xf32>
    %15 = arith.addf %9, %14 : vector<9x128xf32>
    %16 = math.sin %15 : vector<9x128xf32>
    %c0_5 = arith.constant 0 : index
    %c0_6 = arith.constant 0 : index
    %17 = vector.load %arg4[%c0_5, %c0_6] : memref<9x9xf32, #tpu.memory_space<vmem>>, vector<9x9xf32>
    %c0_7 = arith.constant 0 : index
    %c0_8 = arith.constant 0 : index
    %18 = vector.load %arg5[%c0_7, %c0_8] : memref<9x1xf32, #tpu.memory_space<vmem>>, vector<9x1xf32>
    %19 = vector.extract_strided_slice %17 {offsets = [0, 0], sizes = [9, 1], strides = [1, 1]} : vector<9x9xf32> to vector<9x1xf32>
    %20 = vector.extract_strided_slice %16 {offsets = [0, 0], sizes = [1, 128], strides = [1, 1]} : vector<9x128xf32> to vector<1x128xf32>
    %21 = vector.broadcast %19 : vector<9x1xf32> to vector<9x128xf32>
    %22 = vector.broadcast %20 : vector<1x128xf32> to vector<9x128xf32>
    %23 = arith.mulf %21, %22 : vector<9x128xf32>
    %24 = vector.broadcast %18 : vector<9x1xf32> to vector<9x128xf32>
    %25 = arith.addf %23, %24 : vector<9x128xf32>
    %26 = vector.extract_strided_slice %17 {offsets = [0, 1], sizes = [9, 1], strides = [1, 1]} : vector<9x9xf32> to vector<9x1xf32>
    %27 = vector.extract_strided_slice %16 {offsets = [1, 0], sizes = [1, 128], strides = [1, 1]} : vector<9x128xf32> to vector<1x128xf32>
    %28 = vector.broadcast %26 : vector<9x1xf32> to vector<9x128xf32>
    %29 = vector.broadcast %27 : vector<1x128xf32> to vector<9x128xf32>
    %30 = arith.mulf %28, %29 : vector<9x128xf32>
    %31 = arith.addf %25, %30 : vector<9x128xf32>
    %32 = vector.extract_strided_slice %17 {offsets = [0, 2], sizes = [9, 1], strides = [1, 1]} : vector<9x9xf32> to vector<9x1xf32>
    %33 = vector.extract_strided_slice %16 {offsets = [2, 0], sizes = [1, 128], strides = [1, 1]} : vector<9x128xf32> to vector<1x128xf32>
    %34 = vector.broadcast %32 : vector<9x1xf32> to vector<9x128xf32>
    %35 = vector.broadcast %33 : vector<1x128xf32> to vector<9x128xf32>
    %36 = arith.mulf %34, %35 : vector<9x128xf32>
    %37 = arith.addf %31, %36 : vector<9x128xf32>
    %38 = vector.extract_strided_slice %17 {offsets = [0, 3], sizes = [9, 1], strides = [1, 1]} : vector<9x9xf32> to vector<9x1xf32>
    %39 = vector.extract_strided_slice %16 {offsets = [3, 0], sizes = [1, 128], strides = [1, 1]} : vector<9x128xf32> to vector<1x128xf32>
    %40 = vector.broadcast %38 : vector<9x1xf32> to vector<9x128xf32>
    %41 = vector.broadcast %39 : vector<1x128xf32> to vector<9x128xf32>
    %42 = arith.mulf %40, %41 : vector<9x128xf32>
    %43 = arith.addf %37, %42 : vector<9x128xf32>
    %44 = vector.extract_strided_slice %17 {offsets = [0, 4], sizes = [9, 1], strides = [1, 1]} : vector<9x9xf32> to vector<9x1xf32>
    %45 = vector.extract_strided_slice %16 {offsets = [4, 0], sizes = [1, 128], strides = [1, 1]} : vector<9x128xf32> to vector<1x128xf32>
    %46 = vector.broadcast %44 : vector<9x1xf32> to vector<9x128xf32>
    %47 = vector.broadcast %45 : vector<1x128xf32> to vector<9x128xf32>
    %48 = arith.mulf %46, %47 : vector<9x128xf32>
    %49 = arith.addf %43, %48 : vector<9x128xf32>
    %50 = vector.extract_strided_slice %17 {offsets = [0, 5], sizes = [9, 1], strides = [1, 1]} : vector<9x9xf32> to vector<9x1xf32>
    %51 = vector.extract_strided_slice %16 {offsets = [5, 0], sizes = [1, 128], strides = [1, 1]} : vector<9x128xf32> to vector<1x128xf32>
    %52 = vector.broadcast %50 : vector<9x1xf32> to vector<9x128xf32>
    %53 = vector.broadcast %51 : vector<1x128xf32> to vector<9x128xf32>
    %54 = arith.mulf %52, %53 : vector<9x128xf32>
    %55 = arith.addf %49, %54 : vector<9x128xf32>
    %56 = vector.extract_strided_slice %17 {offsets = [0, 6], sizes = [9, 1], strides = [1, 1]} : vector<9x9xf32> to vector<9x1xf32>
    %57 = vector.extract_strided_slice %16 {offsets = [6, 0], sizes = [1, 128], strides = [1, 1]} : vector<9x128xf32> to vector<1x128xf32>
    %58 = vector.broadcast %56 : vector<9x1xf32> to vector<9x128xf32>
    %59 = vector.broadcast %57 : vector<1x128xf32> to vector<9x128xf32>
    %60 = arith.mulf %58, %59 : vector<9x128xf32>
    %61 = arith.addf %55, %60 : vector<9x128xf32>
    %62 = vector.extract_strided_slice %17 {offsets = [0, 7], sizes = [9, 1], strides = [1, 1]} : vector<9x9xf32> to vector<9x1xf32>
    %63 = vector.extract_strided_slice %16 {offsets = [7, 0], sizes = [1, 128], strides = [1, 1]} : vector<9x128xf32> to vector<1x128xf32>
    %64 = vector.broadcast %62 : vector<9x1xf32> to vector<9x128xf32>
    %65 = vector.broadcast %63 : vector<1x128xf32> to vector<9x128xf32>
    %66 = arith.mulf %64, %65 : vector<9x128xf32>
    %67 = arith.addf %61, %66 : vector<9x128xf32>
    %68 = vector.extract_strided_slice %17 {offsets = [0, 8], sizes = [9, 1], strides = [1, 1]} : vector<9x9xf32> to vector<9x1xf32>
    %69 = vector.extract_strided_slice %16 {offsets = [8, 0], sizes = [1, 128], strides = [1, 1]} : vector<9x128xf32> to vector<1x128xf32>
    %70 = vector.broadcast %68 : vector<9x1xf32> to vector<9x128xf32>
    %71 = vector.broadcast %69 : vector<1x128xf32> to vector<9x128xf32>
    %72 = arith.mulf %70, %71 : vector<9x128xf32>
    %73 = arith.addf %67, %72 : vector<9x128xf32>
    %74 = math.sin %73 : vector<9x128xf32>
    %c0_9 = arith.constant 0 : index
    %c0_10 = arith.constant 0 : index
    %75 = vector.load %arg6[%c0_9, %c0_10] : memref<12x9xf32, #tpu.memory_space<vmem>>, vector<12x9xf32>
    %c0_11 = arith.constant 0 : index
    %c0_12 = arith.constant 0 : index
    %76 = vector.load %arg7[%c0_11, %c0_12] : memref<12x1xf32, #tpu.memory_space<vmem>>, vector<12x1xf32>
    %77 = vector.extract_strided_slice %75 {offsets = [0, 0], sizes = [12, 1], strides = [1, 1]} : vector<12x9xf32> to vector<12x1xf32>
    %78 = vector.extract_strided_slice %74 {offsets = [0, 0], sizes = [1, 128], strides = [1, 1]} : vector<9x128xf32> to vector<1x128xf32>
    %79 = vector.broadcast %77 : vector<12x1xf32> to vector<12x128xf32>
    %80 = vector.broadcast %78 : vector<1x128xf32> to vector<12x128xf32>
    %81 = arith.mulf %79, %80 : vector<12x128xf32>
    %82 = vector.broadcast %76 : vector<12x1xf32> to vector<12x128xf32>
    %83 = arith.addf %81, %82 : vector<12x128xf32>
    %84 = vector.extract_strided_slice %75 {offsets = [0, 1], sizes = [12, 1], strides = [1, 1]} : vector<12x9xf32> to vector<12x1xf32>
    %85 = vector.extract_strided_slice %74 {offsets = [1, 0], sizes = [1, 128], strides = [1, 1]} : vector<9x128xf32> to vector<1x128xf32>
    %86 = vector.broadcast %84 : vector<12x1xf32> to vector<12x128xf32>
    %87 = vector.broadcast %85 : vector<1x128xf32> to vector<12x128xf32>
    %88 = arith.mulf %86, %87 : vector<12x128xf32>
    %89 = arith.addf %83, %88 : vector<12x128xf32>
    %90 = vector.extract_strided_slice %75 {offsets = [0, 2], sizes = [12, 1], strides = [1, 1]} : vector<12x9xf32> to vector<12x1xf32>
    %91 = vector.extract_strided_slice %74 {offsets = [2, 0], sizes = [1, 128], strides = [1, 1]} : vector<9x128xf32> to vector<1x128xf32>
    %92 = vector.broadcast %90 : vector<12x1xf32> to vector<12x128xf32>
    %93 = vector.broadcast %91 : vector<1x128xf32> to vector<12x128xf32>
    %94 = arith.mulf %92, %93 : vector<12x128xf32>
    %95 = arith.addf %89, %94 : vector<12x128xf32>
    %96 = vector.extract_strided_slice %75 {offsets = [0, 3], sizes = [12, 1], strides = [1, 1]} : vector<12x9xf32> to vector<12x1xf32>
    %97 = vector.extract_strided_slice %74 {offsets = [3, 0], sizes = [1, 128], strides = [1, 1]} : vector<9x128xf32> to vector<1x128xf32>
    %98 = vector.broadcast %96 : vector<12x1xf32> to vector<12x128xf32>
    %99 = vector.broadcast %97 : vector<1x128xf32> to vector<12x128xf32>
    %100 = arith.mulf %98, %99 : vector<12x128xf32>
    %101 = arith.addf %95, %100 : vector<12x128xf32>
    %102 = vector.extract_strided_slice %75 {offsets = [0, 4], sizes = [12, 1], strides = [1, 1]} : vector<12x9xf32> to vector<12x1xf32>
    %103 = vector.extract_strided_slice %74 {offsets = [4, 0], sizes = [1, 128], strides = [1, 1]} : vector<9x128xf32> to vector<1x128xf32>
    %104 = vector.broadcast %102 : vector<12x1xf32> to vector<12x128xf32>
    %105 = vector.broadcast %103 : vector<1x128xf32> to vector<12x128xf32>
    %106 = arith.mulf %104, %105 : vector<12x128xf32>
    %107 = arith.addf %101, %106 : vector<12x128xf32>
    %108 = vector.extract_strided_slice %75 {offsets = [0, 5], sizes = [12, 1], strides = [1, 1]} : vector<12x9xf32> to vector<12x1xf32>
    %109 = vector.extract_strided_slice %74 {offsets = [5, 0], sizes = [1, 128], strides = [1, 1]} : vector<9x128xf32> to vector<1x128xf32>
    %110 = vector.broadcast %108 : vector<12x1xf32> to vector<12x128xf32>
    %111 = vector.broadcast %109 : vector<1x128xf32> to vector<12x128xf32>
    %112 = arith.mulf %110, %111 : vector<12x128xf32>
    %113 = arith.addf %107, %112 : vector<12x128xf32>
    %114 = vector.extract_strided_slice %75 {offsets = [0, 6], sizes = [12, 1], strides = [1, 1]} : vector<12x9xf32> to vector<12x1xf32>
    %115 = vector.extract_strided_slice %74 {offsets = [6, 0], sizes = [1, 128], strides = [1, 1]} : vector<9x128xf32> to vector<1x128xf32>
    %116 = vector.broadcast %114 : vector<12x1xf32> to vector<12x128xf32>
    %117 = vector.broadcast %115 : vector<1x128xf32> to vector<12x128xf32>
    %118 = arith.mulf %116, %117 : vector<12x128xf32>
    %119 = arith.addf %113, %118 : vector<12x128xf32>
    %120 = vector.extract_strided_slice %75 {offsets = [0, 7], sizes = [12, 1], strides = [1, 1]} : vector<12x9xf32> to vector<12x1xf32>
    %121 = vector.extract_strided_slice %74 {offsets = [7, 0], sizes = [1, 128], strides = [1, 1]} : vector<9x128xf32> to vector<1x128xf32>
    %122 = vector.broadcast %120 : vector<12x1xf32> to vector<12x128xf32>
    %123 = vector.broadcast %121 : vector<1x128xf32> to vector<12x128xf32>
    %124 = arith.mulf %122, %123 : vector<12x128xf32>
    %125 = arith.addf %119, %124 : vector<12x128xf32>
    %126 = vector.extract_strided_slice %75 {offsets = [0, 8], sizes = [12, 1], strides = [1, 1]} : vector<12x9xf32> to vector<12x1xf32>
    %127 = vector.extract_strided_slice %74 {offsets = [8, 0], sizes = [1, 128], strides = [1, 1]} : vector<9x128xf32> to vector<1x128xf32>
    %128 = vector.broadcast %126 : vector<12x1xf32> to vector<12x128xf32>
    %129 = vector.broadcast %127 : vector<1x128xf32> to vector<12x128xf32>
    %130 = arith.mulf %128, %129 : vector<12x128xf32>
    %131 = arith.addf %125, %130 : vector<12x128xf32>
    %c0_13 = arith.constant 0 : index
    %c0_14 = arith.constant 0 : index
    %132 = vector.load %arg8[%c0_13, %c0_14] : memref<12x128xf32, #tpu.memory_space<vmem>>, vector<12x128xf32>
    tpu.vector_store %arg8[%c0_13, %c0_14], %131 {strides = array<i32>} : memref<12x128xf32, #tpu.memory_space<vmem>>, vector<12x128xf32>,
    return
  }
  func.func @transform_0(%arg0: i32) -> (i32, i32) {
    %c0_i32 = arith.constant 0 : i32
    %c0_i32_0 = arith.constant 0 : i32
    return %c0_i32, %arg0 : i32, i32
  }
  func.func @transform_1(%arg0: i32) -> (i32, i32) {
    %c0_i32 = arith.constant 0 : i32
    %c0_i32_0 = arith.constant 0 : i32
    %c0_i32_1 = arith.constant 0 : i32
    return %c0_i32, %c0_i32_0 : i32, i32
  }
  func.func @transform_2(%arg0: i32) -> (i32, i32) {
    %c0_i32 = arith.constant 0 : i32
    %c0_i32_0 = arith.constant 0 : i32
    %c0_i32_1 = arith.constant 0 : i32
    return %c0_i32, %c0_i32_0 : i32, i32
  }
  func.func @transform_3(%arg0: i32) -> (i32, i32) {
    %c0_i32 = arith.constant 0 : i32
    %c0_i32_0 = arith.constant 0 : i32
    %c0_i32_1 = arith.constant 0 : i32
    return %c0_i32, %c0_i32_0 : i32, i32
  }
  func.func @transform_4(%arg0: i32) -> (i32, i32) {
    %c0_i32 = arith.constant 0 : i32
    %c0_i32_0 = arith.constant 0 : i32
    %c0_i32_1 = arith.constant 0 : i32
    return %c0_i32, %c0_i32_0 : i32, i32
  }
  func.func @transform_5(%arg0: i32) -> (i32, i32) {
    %c0_i32 = arith.constant 0 : i32
    %c0_i32_0 = arith.constant 0 : i32
    %c0_i32_1 = arith.constant 0 : i32
    return %c0_i32, %c0_i32_0 : i32, i32
  }
  func.func @transform_6(%arg0: i32) -> (i32, i32) {
    %c0_i32 = arith.constant 0 : i32
    %c0_i32_0 = arith.constant 0 : i32
    %c0_i32_1 = arith.constant 0 : i32
    return %c0_i32, %c0_i32_0 : i32, i32
  }
  func.func @transform_7(%arg0: i32) -> (i32, i32) {
    %c0_i32 = arith.constant 0 : i32
    %c0_i32_0 = arith.constant 0 : i32
    return %c0_i32, %arg0 : i32, i32
  }
}

</mosaic_0001>

<llo_original>
// kernel: tpu_custom_call.1
$region0: #{tpu_custom_call.1}
  #allocation0 [shape = 'u32[]', space=smem, size = 0x4, offset = 0x4, fixed_abs, tag = 'smem constant byte address 0x4 - core index']
  #allocation1 [shape = 'u32[144,128]{1,0:T(1,128)}', space=vmem, size = 0x12000, scoped, tag = 'internal scratch']
  %s0 = inlined_call_operand.vmem [shape: f32[2,128], index: 0, kind: input, shape index: {}]
  %s1 = inlined_call_operand.vmem [shape: f32[9,2], index: 1, kind: input, shape index: {}]
  %s2 = inlined_call_operand.vmem [shape: f32[9,1], index: 2, kind: input, shape index: {}]
  %s3 = inlined_call_operand.vmem [shape: f32[9,9], index: 3, kind: input, shape index: {}]
  %s4 = inlined_call_operand.vmem [shape: f32[9,1], index: 4, kind: input, shape index: {}]
  %s5 = inlined_call_operand.vmem [shape: f32[12,9], index: 5, kind: input, shape index: {}]
  %s6 = inlined_call_operand.vmem [shape: f32[12,1], index: 6, kind: input, shape index: {}]
  %s7 = inlined_call_operand.hbm [shape: f32[12,128], index: 7, kind: output, shape index: {}]
  %s8 = sld [smem:[#allocation0]]
  $region38: #{tpu_custom_call.1} parent=0
    _
  %s10 = ssub.s32 1, %s8
  %s11 = scalar_select 0, %s10, %s8
  $region1: #{tpu_custom_call.1} parent=0
    #allocation2 [shape = 'u8[8192]{0}', space=vmem, size = 0x2000, scoped, tag = 'output window, operand 0, single buffered']
    #allocation3 [shape = 's32[1]{0}', space=sflag, size = 0x4, scoped, tag = 'scoped memory for tpu_custom_call.1']
    %12 = vsyncpa [#allocation3], 0
    // Predicated region
    $region2: #{tpu_custom_call.1} parent=1 // pred_check
      _
    $region3: #{tpu_custom_call.1} parent=1 // pred_check_branch
      %14 = sbr.rel (0) target = $region5
    $region4: #{tpu_custom_call.1} parent=1 // pred_region
      _
    $region5: #{tpu_custom_call.1} parent=1 // pred_fallthru
      _
    // Predicated region
    $region6: #{tpu_custom_call.1} parent=1 // pred_check
      _
    $region7: #{tpu_custom_call.1} parent=1 // pred_check_branch
      %16 = sbr.rel (0) target = $region9
    $region8: #{tpu_custom_call.1} parent=1 // pred_region
      _
    $region9: #{tpu_custom_call.1} parent=1 // pred_fallthru
      _
    // Predicated region
    $region10: #{tpu_custom_call.1} parent=1 // pred_check
      _
    $region11: #{tpu_custom_call.1} parent=1 // pred_check_branch
      %18 = sbr.rel (0) target = $region13
    $region12: #{tpu_custom_call.1} parent=1 // pred_region
      _
    $region13: #{tpu_custom_call.1} parent=1 // pred_fallthru
      _
    // Predicated region
    $region14: #{tpu_custom_call.1} parent=1 // pred_check
      _
    $region15: #{tpu_custom_call.1} parent=1 // pred_check_branch
      %20 = sbr.rel (0) target = $region17
    $region16: #{tpu_custom_call.1} parent=1 // pred_region
      _
    $region17: #{tpu_custom_call.1} parent=1 // pred_fallthru
      _
    // Predicated region
    $region18: #{tpu_custom_call.1} parent=1 // pred_check
      _
    $region19: #{tpu_custom_call.1} parent=1 // pred_check_branch
      %22 = sbr.rel (0) target = $region21
    $region20: #{tpu_custom_call.1} parent=1 // pred_region
      _
    $region21: #{tpu_custom_call.1} parent=1 // pred_fallthru
      _
    // Predicated region
    $region22: #{tpu_custom_call.1} parent=1 // pred_check
      _
    $region23: #{tpu_custom_call.1} parent=1 // pred_check_branch
      %24 = sbr.rel (0) target = $region25
    $region24: #{tpu_custom_call.1} parent=1 // pred_region
      _
    $region25: #{tpu_custom_call.1} parent=1 // pred_fallthru
      _
    // Predicated region
    $region26: #{tpu_custom_call.1} parent=1 // pred_check
      _
    $region27: #{tpu_custom_call.1} parent=1 // pred_check_branch
      %26 = sbr.rel (0) target = $region29
    $region28: #{tpu_custom_call.1} parent=1 // pred_region
      _
    $region29: #{tpu_custom_call.1} parent=1 // pred_fallthru
      _
    %v27 = vld [vmem:[%s1] sm:$0xff]
    %v28 = vld [vmem:[%s1 + $0x8] sm:$0x1]
    %v29 = vld [vmem:[%s2] sm:$0xff]
    %v30 = vld [vmem:[%s2 + $0x8] sm:$0x1]
    %v31 = vld [vmem:[%s0] sm:$0x3]
    %33 = vset.pattern.permute.xlu0 0
    %34 = vperm.xlu0 %33, %v27
    %v35 = vpop.permute.xlu0 %34
    %38 = vset.pattern.permute.xlu0 0
    %39 = vperm.xlu0 %38, %v28
    %v40 = vpop.permute.xlu0 %39
    %v42 = vlaneseq
    %v43 = vshrl.u32 %v42, 7
    %v44 = vsub.s32 0, %v43
    %v45 = vrot.slane %v31, %v44
    %v46 = vmul.f32 %v35, %v45
    %v47 = vmul.f32 %v40, %v45
    %49 = vset.pattern.permute.xlu0 0
    %50 = vperm.xlu0 %49, %v29
    %v51 = vpop.permute.xlu0 %50
    %54 = vset.pattern.permute.xlu0 0
    %55 = vperm.xlu0 %54, %v30
    %v56 = vpop.permute.xlu0 %55
    %v58 = vadd.f32 %v46, %v51
    %v59 = vadd.f32 %v47, %v56
    %60 = vset.pattern.permute.xlu0 1
    %61 = vperm.xlu0 %60, %v27
    %v62 = vpop.permute.xlu0 %61
    %64 = vset.pattern.permute.xlu0 1
    %65 = vperm.xlu0 %64, %v28
    %v66 = vpop.permute.xlu0 %65
    %v68 = vlaneseq
    %v69 = vshrl.u32 %v68, 7
    %v70 = vsub.s32 1, %v69
    %v71 = vrot.slane %v31, %v70
    %v72 = vmul.f32 %v62, %v71
    %v73 = vmul.f32 %v66, %v71
    %v74 = vadd.f32 %v58, %v72
    %v75 = vadd.f32 %v59, %v73
    %v76 = vand.u32 2147483647, %v74
    %vm77 = vcmp.le.f32.partialorder %v76, 0.7853982
    %vm78 = vcmp.lt.s32.totalorder %v74, 0
    %v79 = vand.u32 %v74, 2139095040
    %v80 = vshrl.u32 %v79, 23
    %v81 = vsub.s32 %v80, 127
    %v82 = vand.u32 2147483647, %v74
    %v83 = vand.u32 %v82, 8388607
    %v84 = vor.u32 %v83, 8388608
    %v85 = vsub.s32 0, %v84
    %v86 = vadd.s32 %v81, 1
    %vm87 = vcmp.gt.s32.totalorder %v86, 0
    %v88 = vsel %vm87, %v86, 0
    %v89 = vshrl.u32 %v88, 5
    %v90 = vand.u32 %v88, 31
    %v91 = vsub.s32 32, %v90
    %v92 = vshrl.u32 683565275, %v91
    %v93 = vshll.u32 683565275, %v90
    %v94 = vshrl.u32 2475754826, %v91
    %v95 = vor.u32 %v93, %v94
    %v96 = vshll.u32 2475754826, %v90
    %v97 = vshrl.u32 2131351028, %v91
    %v98 = vor.u32 %v96, %v97
    %v99 = vshll.u32 2131351028, %v90
    %v100 = vshrl.u32 2102212464, %v91
    %v101 = vor.u32 %v99, %v100
    %v102 = vshll.u32 2102212464, %v90
    %v103 = vshrl.u32 920167782, %v91
    %v104 = vor.u32 %v102, %v103
    %v105 = vshll.u32 920167782, %v90
    %v106 = vshrl.u32 1326507024, %v91
    %v107 = vor.u32 %v105, %v106
    %vm108 = vcmp.lt.s32.totalorder %v89, 1
    %vm109 = vcmp.lt.s32.totalorder %v89, 2
    %vm110 = vcmp.lt.s32.totalorder %v89, 3
    %vm111 = vcmp.lt.s32.totalorder %v89, 4
    %v112 = vsel %vm108, %v92, %v95
    %v113 = vsel %vm111, %v101, 2102212464
    %v114 = vsel %vm110, %v98, %v113
    %v115 = vsel %vm109, %v112, %v114
    %v116 = vsel %vm108, %v95, %v98
    %v117 = vsel %vm111, %v104, 920167782
    %v118 = vsel %vm110, %v101, %v117
    %v119 = vsel %vm109, %v116, %v118
    %v120 = vsel %vm108, %v98, %v101
    %v121 = vsel %vm111, %v107, 1326507024
    %v122 = vsel %vm110, %v104, %v121
    %v123 = vsel %vm109, %v120, %v122
    %v124 = vshll.u32 %v84, 8
    %v125 = vmul.u32.u64.compose %v124, %v123
    %v126 = vextract.low.u32 %v125
    %v127 = vextract.high.u32 %v125
    %v128 = vmul.u32.u64.compose %v124, %v119
    %v129 = vextract.low.u32 %v128
    %v130 = vextract.high.u32 %v128
    %v131 = vmul.u32 %v124, %v115
    %v132 = vadd.s32 %v127, %v129
    %vm133 = vc.u32 %v127, %v129
    %v134 = vadd.s32 %v130, 1
    %v135 = vsel %vm133, %v134, %v130
    %v136 = vadd.s32 %v131, %v135
    %v137 = vadd.s32 %v136, 536870912
    %v138 = vshrl.u32 %v137, 30
    %v139 = vshll.u32 %v138, 30
    %v140 = vsub.s32 %v136, %v139
    %vm141 = vcmp.lt.s32.totalorder %v140, 0
    %v142 = vsub.s32 0, %v140
    %v143 = vsel %vm141, %v142, %v140
    %v144 = vclz %v143
    %v145 = vsub.s32 %v144, 2
    %vm146 = vcmp.gt.s32.totalorder 0, %v145
    %v147 = vsel %vm146, 0, %v145
    %v148 = vsub.s32 32, %v147
    %v149 = vshll.u32 %v140, %v147
    %v150 = vshrl.u32 %v132, %v148
    %v151 = vor.u32 %v149, %v150
    %v152 = vsub.s32 4294967266, %v147
    %v153 = vadd.s32 %v152, 127
    %v154 = vshll.u32 %v153, 23
    %v155 = vor.u32 4788187, %v154
    %v156 = vand.u32 2147483647, %v155
    %v158 = vcvt.s32.f32 %v151
    %v159 = vmul.f32 %v158, %v156
    %v160 = vxor.u32 %v159, 2147483648
    %v161 = vsel %vm78, %v160, %v159
    %v162 = vsub.s32 4, %v138
    %v163 = vsel %vm78, %v162, %v138
    %v164 = vsel %vm77, %v74, %v161
    %v165 = vsel %vm77, 0, %v163
    %v166 = vcosq.f32.pop %v164
    %v167 = vsinq.f32.pop %v164
    %vm168 = vweird.f32 %v74
    %v169 = vadd.s32 %v165, 3
    %v170 = vand.u32 %v169, 3
    %vm171 = vcmp.lt.s32.totalorder %v170, 2
    %vm172 = vcmp.eq.s32.totalorder %v170, 0
    %v173 = vxor.u32 %v167, 2147483648
    %v174 = vsel %vm172, %v166, %v173
    %vm175 = vcmp.eq.s32.totalorder %v170, 2
    %v176 = vxor.u32 %v166, 2147483648
    %v177 = vsel %vm175, %v176, %v167
    %v178 = vsel %vm171, %v174, %v177
    %v179 = vsel %vm168, nan, %v178
    %v180 = vand.u32 2147483647, %v75
    %vm181 = vcmp.le.f32.partialorder %v180, 0.7853982
    %vm182 = vcmp.lt.s32.totalorder %v75, 0
    %v183 = vand.u32 %v75, 2139095040
    %v184 = vshrl.u32 %v183, 23
    %v185 = vsub.s32 %v184, 127
    %v186 = vand.u32 2147483647, %v75
    %v187 = vand.u32 %v186, 8388607
    %v188 = vor.u32 %v187, 8388608
    %v189 = vsub.s32 0, %v188
    %v190 = vadd.s32 %v185, 1
    %vm191 = vcmp.gt.s32.totalorder %v190, 0
    %v192 = vsel %vm191, %v190, 0
    %v193 = vshrl.u32 %v192, 5
    %v194 = vand.u32 %v192, 31
    %v195 = vsub.s32 32, %v194
    %v196 = vshrl.u32 683565275, %v195
    %v197 = vshll.u32 683565275, %v194
    %v198 = vshrl.u32 2475754826, %v195
    %v199 = vor.u32 %v197, %v198
    %v200 = vshll.u32 2475754826, %v194
    %v201 = vshrl.u32 2131351028, %v195
    %v202 = vor.u32 %v200, %v201
    %v203 = vshll.u32 2131351028, %v194
    %v204 = vshrl.u32 2102212464, %v195
    %v205 = vor.u32 %v203, %v204
    %v206 = vshll.u32 2102212464, %v194
    %v207 = vshrl.u32 920167782, %v195
    %v208 = vor.u32 %v206, %v207
    %v209 = vshll.u32 920167782, %v194
    %v210 = vshrl.u32 1326507024, %v195
    %v211 = vor.u32 %v209, %v210
    %vm212 = vcmp.lt.s32.totalorder %v193, 1
    %vm213 = vcmp.lt.s32.totalorder %v193, 2
    %vm214 = vcmp.lt.s32.totalorder %v193, 3
    %vm215 = vcmp.lt.s32.totalorder %v193, 4
    %v216 = vsel %vm212, %v196, %v199
    %v217 = vsel %vm215, %v205, 2102212464
    %v218 = vsel %vm214, %v202, %v217
    %v219 = vsel %vm213, %v216, %v218
    %v220 = vsel %vm212, %v199, %v202
    %v221 = vsel %vm215, %v208, 920167782
    %v222 = vsel %vm214, %v205, %v221
    %v223 = vsel %vm213, %v220, %v222
    %v224 = vsel %vm212, %v202, %v205
    %v225 = vsel %vm215, %v211, 1326507024
    %v226 = vsel %vm214, %v208, %v225
    %v227 = vsel %vm213, %v224, %v226
    %v228 = vshll.u32 %v188, 8
    %v229 = vmul.u32.u64.compose %v228, %v227
    %v230 = vextract.low.u32 %v229
    %v231 = vextract.high.u32 %v229
    %v232 = vmul.u32.u64.compose %v228, %v223
    %v233 = vextract.low.u32 %v232
    %v234 = vextract.high.u32 %v232
    %v235 = vmul.u32 %v228, %v219
    %v236 = vadd.s32 %v231, %v233
    %vm237 = vc.u32 %v231, %v233
    %v238 = vadd.s32 %v234, 1
    %v239 = vsel %vm237, %v238, %v234
    %v240 = vadd.s32 %v235, %v239
    %v241 = vadd.s32 %v240, 536870912
    %v242 = vshrl.u32 %v241, 30
    %v243 = vshll.u32 %v242, 30
    %v244 = vsub.s32 %v240, %v243
    %vm245 = vcmp.lt.s32.totalorder %v244, 0
    %v246 = vsub.s32 0, %v244
    %v247 = vsel %vm245, %v246, %v244
    %v248 = vclz %v247
    %v249 = vsub.s32 %v248, 2
    %vm250 = vcmp.gt.s32.totalorder 0, %v249
    %v251 = vsel %vm250, 0, %v249
    %v252 = vsub.s32 32, %v251
    %v253 = vshll.u32 %v244, %v251
    %v254 = vshrl.u32 %v236, %v252
    %v255 = vor.u32 %v253, %v254
    %v256 = vsub.s32 4294967266, %v251
    %v257 = vadd.s32 %v256, 127
    %v258 = vshll.u32 %v257, 23
    %v259 = vor.u32 4788187, %v258
    %v260 = vand.u32 2147483647, %v259
    %v262 = vcvt.s32.f32 %v255
    %v263 = vmul.f32 %v262, %v260
    %v264 = vxor.u32 %v263, 2147483648
    %v265 = vsel %vm182, %v264, %v263
    %v266 = vsub.s32 4, %v242
    %v267 = vsel %vm182, %v266, %v242
    %v268 = vsel %vm181, %v75, %v265
    %v269 = vsel %vm181, 0, %v267
    %v270 = vcosq.f32.pop %v268
    %v271 = vsinq.f32.pop %v268
    %vm272 = vweird.f32 %v75
    %v273 = vadd.s32 %v269, 3
    %v274 = vand.u32 %v273, 3
    %vm275 = vcmp.lt.s32.totalorder %v274, 2
    %vm276 = vcmp.eq.s32.totalorder %v274, 0
    %v277 = vxor.u32 %v271, 2147483648
    %v278 = vsel %vm276, %v270, %v277
    %vm279 = vcmp.eq.s32.totalorder %v274, 2
    %v280 = vxor.u32 %v270, 2147483648
    %v281 = vsel %vm279, %v280, %v271
    %v282 = vsel %vm275, %v278, %v281
    %v283 = vsel %vm272, nan, %v282
    %v284 = vld [vmem:[%s3] sm:$0xff]
    %v285 = vld [vmem:[%s3 + $0x8] sm:$0x1]
    %v286 = vld [vmem:[%s4] sm:$0xff]
    %v287 = vld [vmem:[%s4 + $0x8] sm:$0x1]
    %289 = vset.pattern.permute.xlu0 0
    %290 = vperm.xlu0 %289, %v284
    %v291 = vpop.permute.xlu0 %290
    %294 = vset.pattern.permute.xlu0 0
    %295 = vperm.xlu0 %294, %v285
    %v296 = vpop.permute.xlu0 %295
    %v298 = vlaneseq
    %v299 = vshrl.u32 %v298, 7
    %v300 = vsub.s32 0, %v299
    %v301 = vrot.slane %v179, %v300
    %v302 = vmul.f32 %v291, %v301
    %v303 = vmul.f32 %v296, %v301
    %305 = vset.pattern.permute.xlu0 0
    %306 = vperm.xlu0 %305, %v286
    %v307 = vpop.permute.xlu0 %306
    %310 = vset.pattern.permute.xlu0 0
    %311 = vperm.xlu0 %310, %v287
    %v312 = vpop.permute.xlu0 %311
    %v314 = vadd.f32 %v302, %v307
    %v315 = vadd.f32 %v303, %v312
    %316 = vset.pattern.permute.xlu0 1
    %317 = vperm.xlu0 %316, %v284
    %v318 = vpop.permute.xlu0 %317
    %320 = vset.pattern.permute.xlu0 1
    %321 = vperm.xlu0 %320, %v285
    %v322 = vpop.permute.xlu0 %321
    %v324 = vlaneseq
    %v325 = vshrl.u32 %v324, 7
    %v326 = vsub.s32 1, %v325
    %v327 = vrot.slane %v179, %v326
    %v328 = vmul.f32 %v318, %v327
    %v329 = vmul.f32 %v322, %v327
    %v330 = vadd.f32 %v314, %v328
    %v331 = vadd.f32 %v315, %v329
    %332 = vset.pattern.permute.xlu0 2
    %333 = vperm.xlu0 %332, %v284
    %v334 = vpop.permute.xlu0 %333
    %336 = vset.pattern.permute.xlu0 2
    %337 = vperm.xlu0 %336, %v285
    %v338 = vpop.permute.xlu0 %337
    %v340 = vlaneseq
    %v341 = vshrl.u32 %v340, 7
    %v342 = vsub.s32 2, %v341
    %v343 = vrot.slane %v179, %v342
    %v344 = vmul.f32 %v334, %v343
    %v345 = vmul.f32 %v338, %v343
    %v346 = vadd.f32 %v330, %v344
    %v347 = vadd.f32 %v331, %v345
    %348 = vset.pattern.permute.xlu0 3
    %349 = vperm.xlu0 %348, %v284
    %v350 = vpop.permute.xlu0 %349
    %352 = vset.pattern.permute.xlu0 3
    %353 = vperm.xlu0 %352, %v285
    %v354 = vpop.permute.xlu0 %353
    %v356 = vlaneseq
    %v357 = vshrl.u32 %v356, 7
    %v358 = vsub.s32 3, %v357
    %v359 = vrot.slane %v179, %v358
    %v360 = vmul.f32 %v350, %v359
    %v361 = vmul.f32 %v354, %v359
    %v362 = vadd.f32 %v346, %v360
    %v363 = vadd.f32 %v347, %v361
    %364 = vset.pattern.permute.xlu0 4
    %365 = vperm.xlu0 %364, %v284
    %v366 = vpop.permute.xlu0 %365
    %368 = vset.pattern.permute.xlu0 4
    %369 = vperm.xlu0 %368, %v285
    %v370 = vpop.permute.xlu0 %369
    %v372 = vlaneseq
    %v373 = vshrl.u32 %v372, 7
    %v374 = vsub.s32 4, %v373
    %v375 = vrot.slane %v179, %v374
    %v376 = vmul.f32 %v366, %v375
    %v377 = vmul.f32 %v370, %v375
    %v378 = vadd.f32 %v362, %v376
    %v379 = vadd.f32 %v363, %v377
    %380 = vset.pattern.permute.xlu0 5
    %381 = vperm.xlu0 %380, %v284
    %v382 = vpop.permute.xlu0 %381
    %384 = vset.pattern.permute.xlu0 5
    %385 = vperm.xlu0 %384, %v285
    %v386 = vpop.permute.xlu0 %385
    %v388 = vlaneseq
    %v389 = vshrl.u32 %v388, 7
    %v390 = vsub.s32 5, %v389
    %v391 = vrot.slane %v179, %v390
    %v392 = vmul.f32 %v382, %v391
    %v393 = vmul.f32 %v386, %v391
    %v394 = vadd.f32 %v378, %v392
    %v395 = vadd.f32 %v379, %v393
    %396 = vset.pattern.permute.xlu0 6
    %397 = vperm.xlu0 %396, %v284
    %v398 = vpop.permute.xlu0 %397
    %400 = vset.pattern.permute.xlu0 6
    %401 = vperm.xlu0 %400, %v285
    %v402 = vpop.permute.xlu0 %401
    %v404 = vlaneseq
    %v405 = vshrl.u32 %v404, 7
    %v406 = vsub.s32 6, %v405
    %v407 = vrot.slane %v179, %v406
    %v408 = vmul.f32 %v398, %v407
    %v409 = vmul.f32 %v402, %v407
    %v410 = vadd.f32 %v394, %v408
    %v411 = vadd.f32 %v395, %v409
    %412 = vset.pattern.permute.xlu0 7
    %413 = vperm.xlu0 %412, %v284
    %v414 = vpop.permute.xlu0 %413
    %416 = vset.pattern.permute.xlu0 7
    %417 = vperm.xlu0 %416, %v285
    %v418 = vpop.permute.xlu0 %417
    %v420 = vlaneseq
    %v421 = vshrl.u32 %v420, 7
    %v422 = vsub.s32 7, %v421
    %v423 = vrot.slane %v179, %v422
    %v424 = vmul.f32 %v414, %v423
    %v425 = vmul.f32 %v418, %v423
    %v426 = vadd.f32 %v410, %v424
    %v427 = vadd.f32 %v411, %v425
    %428 = vset.pattern.permute.xlu0 8
    %429 = vperm.xlu0 %428, %v284
    %v430 = vpop.permute.xlu0 %429
    %432 = vset.pattern.permute.xlu0 8
    %433 = vperm.xlu0 %432, %v285
    %v434 = vpop.permute.xlu0 %433
    %v436 = vlaneseq
    %v437 = vshrl.u32 %v436, 7
    %v438 = vsub.s32 0, %v437
    %v439 = vrot.slane %v283, %v438
    %v440 = vmul.f32 %v430, %v439
    %v441 = vmul.f32 %v434, %v439
    %v442 = vadd.f32 %v426, %v440
    %v443 = vadd.f32 %v427, %v441
    %v444 = vand.u32 2147483647, %v442
    %vm445 = vcmp.le.f32.partialorder %v444, 0.7853982
    %vm446 = vcmp.lt.s32.totalorder %v442, 0
    %v447 = vand.u32 %v442, 2139095040
    %v448 = vshrl.u32 %v447, 23
    %v449 = vsub.s32 %v448, 127
    %v450 = vand.u32 2147483647, %v442
    %v451 = vand.u32 %v450, 8388607
    %v452 = vor.u32 %v451, 8388608
    %v453 = vsub.s32 0, %v452
    %v454 = vadd.s32 %v449, 1
    %vm455 = vcmp.gt.s32.totalorder %v454, 0
    %v456 = vsel %vm455, %v454, 0
    %v457 = vshrl.u32 %v456, 5
    %v458 = vand.u32 %v456, 31
    %v459 = vsub.s32 32, %v458
    %v460 = vshrl.u32 683565275, %v459
    %v461 = vshll.u32 683565275, %v458
    %v462 = vshrl.u32 2475754826, %v459
    %v463 = vor.u32 %v461, %v462
    %v464 = vshll.u32 2475754826, %v458
    %v465 = vshrl.u32 2131351028, %v459
    %v466 = vor.u32 %v464, %v465
    %v467 = vshll.u32 2131351028, %v458
    %v468 = vshrl.u32 2102212464, %v459
    %v469 = vor.u32 %v467, %v468
    %v470 = vshll.u32 2102212464, %v458
    %v471 = vshrl.u32 920167782, %v459
    %v472 = vor.u32 %v470, %v471
    %v473 = vshll.u32 920167782, %v458
    %v474 = vshrl.u32 1326507024, %v459
    %v475 = vor.u32 %v473, %v474
    %vm476 = vcmp.lt.s32.totalorder %v457, 1
    %vm477 = vcmp.lt.s32.totalorder %v457, 2
    %vm478 = vcmp.lt.s32.totalorder %v457, 3
    %vm479 = vcmp.lt.s32.totalorder %v457, 4
    %v480 = vsel %vm476, %v460, %v463
    %v481 = vsel %vm479, %v469, 2102212464
    %v482 = vsel %vm478, %v466, %v481
    %v483 = vsel %vm477, %v480, %v482
    %v484 = vsel %vm476, %v463, %v466
    %v485 = vsel %vm479, %v472, 920167782
    %v486 = vsel %vm478, %v469, %v485
    %v487 = vsel %vm477, %v484, %v486
    %v488 = vsel %vm476, %v466, %v469
    %v489 = vsel %vm479, %v475, 1326507024
    %v490 = vsel %vm478, %v472, %v489
    %v491 = vsel %vm477, %v488, %v490
    %v492 = vshll.u32 %v452, 8
    %v493 = vmul.u32.u64.compose %v492, %v491
    %v494 = vextract.low.u32 %v493
    %v495 = vextract.high.u32 %v493
    %v496 = vmul.u32.u64.compose %v492, %v487
    %v497 = vextract.low.u32 %v496
    %v498 = vextract.high.u32 %v496
    %v499 = vmul.u32 %v492, %v483
    %v500 = vadd.s32 %v495, %v497
    %vm501 = vc.u32 %v495, %v497
    %v502 = vadd.s32 %v498, 1
    %v503 = vsel %vm501, %v502, %v498
    %v504 = vadd.s32 %v499, %v503
    %v505 = vadd.s32 %v504, 536870912
    %v506 = vshrl.u32 %v505, 30
    %v507 = vshll.u32 %v506, 30
    %v508 = vsub.s32 %v504, %v507
    %vm509 = vcmp.lt.s32.totalorder %v508, 0
    %v510 = vsub.s32 0, %v508
    %v511 = vsel %vm509, %v510, %v508
    %v512 = vclz %v511
    %v513 = vsub.s32 %v512, 2
    %vm514 = vcmp.gt.s32.totalorder 0, %v513
    %v515 = vsel %vm514, 0, %v513
    %v516 = vsub.s32 32, %v515
    %v517 = vshll.u32 %v508, %v515
    %v518 = vshrl.u32 %v500, %v516
    %v519 = vor.u32 %v517, %v518
    %v520 = vsub.s32 4294967266, %v515
    %v521 = vadd.s32 %v520, 127
    %v522 = vshll.u32 %v521, 23
    %v523 = vor.u32 4788187, %v522
    %v524 = vand.u32 2147483647, %v523
    %v526 = vcvt.s32.f32 %v519
    %v527 = vmul.f32 %v526, %v524
    %v528 = vxor.u32 %v527, 2147483648
    %v529 = vsel %vm446, %v528, %v527
    %v530 = vsub.s32 4, %v506
    %v531 = vsel %vm446, %v530, %v506
    %v532 = vsel %vm445, %v442, %v529
    %v533 = vsel %vm445, 0, %v531
    %v534 = vcosq.f32.pop %v532
    %v535 = vsinq.f32.pop %v532
    %vm536 = vweird.f32 %v442
    %v537 = vadd.s32 %v533, 3
    %v538 = vand.u32 %v537, 3
    %vm539 = vcmp.lt.s32.totalorder %v538, 2
    %vm540 = vcmp.eq.s32.totalorder %v538, 0
    %v541 = vxor.u32 %v535, 2147483648
    %v542 = vsel %vm540, %v534, %v541
    %vm543 = vcmp.eq.s32.totalorder %v538, 2
    %v544 = vxor.u32 %v534, 2147483648
    %v545 = vsel %vm543, %v544, %v535
    %v546 = vsel %vm539, %v542, %v545
    %v547 = vsel %vm536, nan, %v546
    %v548 = vand.u32 2147483647, %v443
    %vm549 = vcmp.le.f32.partialorder %v548, 0.7853982
    %vm550 = vcmp.lt.s32.totalorder %v443, 0
    %v551 = vand.u32 %v443, 2139095040
    %v552 = vshrl.u32 %v551, 23
    %v553 = vsub.s32 %v552, 127
    %v554 = vand.u32 2147483647, %v443
    %v555 = vand.u32 %v554, 8388607
    %v556 = vor.u32 %v555, 8388608
    %v557 = vsub.s32 0, %v556
    %v558 = vadd.s32 %v553, 1
    %vm559 = vcmp.gt.s32.totalorder %v558, 0
    %v560 = vsel %vm559, %v558, 0
    %v561 = vshrl.u32 %v560, 5
    %v562 = vand.u32 %v560, 31
    %v563 = vsub.s32 32, %v562
    %v564 = vshrl.u32 683565275, %v563
    %v565 = vshll.u32 683565275, %v562
    %v566 = vshrl.u32 2475754826, %v563
    %v567 = vor.u32 %v565, %v566
    %v568 = vshll.u32 2475754826, %v562
    %v569 = vshrl.u32 2131351028, %v563
    %v570 = vor.u32 %v568, %v569
    %v571 = vshll.u32 2131351028, %v562
    %v572 = vshrl.u32 2102212464, %v563
    %v573 = vor.u32 %v571, %v572
    %v574 = vshll.u32 2102212464, %v562
    %v575 = vshrl.u32 920167782, %v563
    %v576 = vor.u32 %v574, %v575
    %v577 = vshll.u32 920167782, %v562
    %v578 = vshrl.u32 1326507024, %v563
    %v579 = vor.u32 %v577, %v578
    %vm580 = vcmp.lt.s32.totalorder %v561, 1
    %vm581 = vcmp.lt.s32.totalorder %v561, 2
    %vm582 = vcmp.lt.s32.totalorder %v561, 3
    %vm583 = vcmp.lt.s32.totalorder %v561, 4
    %v584 = vsel %vm580, %v564, %v567
    %v585 = vsel %vm583, %v573, 2102212464
    %v586 = vsel %vm582, %v570, %v585
    %v587 = vsel %vm581, %v584, %v586
    %v588 = vsel %vm580, %v567, %v570
    %v589 = vsel %vm583, %v576, 920167782
    %v590 = vsel %vm582, %v573, %v589
    %v591 = vsel %vm581, %v588, %v590
    %v592 = vsel %vm580, %v570, %v573
    %v593 = vsel %vm583, %v579, 1326507024
    %v594 = vsel %vm582, %v576, %v593
    %v595 = vsel %vm581, %v592, %v594
    %v596 = vshll.u32 %v556, 8
    %v597 = vmul.u32.u64.compose %v596, %v595
    %v598 = vextract.low.u32 %v597
    %v599 = vextract.high.u32 %v597
    %v600 = vmul.u32.u64.compose %v596, %v591
    %v601 = vextract.low.u32 %v600
    %v602 = vextract.high.u32 %v600
    %v603 = vmul.u32 %v596, %v587
    %v604 = vadd.s32 %v599, %v601
    %vm605 = vc.u32 %v599, %v601
    %v606 = vadd.s32 %v602, 1
    %v607 = vsel %vm605, %v606, %v602
    %v608 = vadd.s32 %v603, %v607
    %v609 = vadd.s32 %v608, 536870912
    %v610 = vshrl.u32 %v609, 30
    %v611 = vshll.u32 %v610, 30
    %v612 = vsub.s32 %v608, %v611
    %vm613 = vcmp.lt.s32.totalorder %v612, 0
    %v614 = vsub.s32 0, %v612
    %v615 = vsel %vm613, %v614, %v612
    %v616 = vclz %v615
    %v617 = vsub.s32 %v616, 2
    %vm618 = vcmp.gt.s32.totalorder 0, %v617
    %v619 = vsel %vm618, 0, %v617
    %v620 = vsub.s32 32, %v619
    %v621 = vshll.u32 %v612, %v619
    %v622 = vshrl.u32 %v604, %v620
    %v623 = vor.u32 %v621, %v622
    %v624 = vsub.s32 4294967266, %v619
    %v625 = vadd.s32 %v624, 127
    %v626 = vshll.u32 %v625, 23
    %v627 = vor.u32 4788187, %v626
    %v628 = vand.u32 2147483647, %v627
    %v630 = vcvt.s32.f32 %v623
    %v631 = vmul.f32 %v630, %v628
    %v632 = vxor.u32 %v631, 2147483648
    %v633 = vsel %vm550, %v632, %v631
    %v634 = vsub.s32 4, %v610
    %v635 = vsel %vm550, %v634, %v610
    %v636 = vsel %vm549, %v443, %v633
    %v637 = vsel %vm549, 0, %v635
    %v638 = vcosq.f32.pop %v636
    %v639 = vsinq.f32.pop %v636
    %vm640 = vweird.f32 %v443
    %v641 = vadd.s32 %v637, 3
    %v642 = vand.u32 %v641, 3
    %vm643 = vcmp.lt.s32.totalorder %v642, 2
    %vm644 = vcmp.eq.s32.totalorder %v642, 0
    %v645 = vxor.u32 %v639, 2147483648
    %v646 = vsel %vm644, %v638, %v645
    %vm647 = vcmp.eq.s32.totalorder %v642, 2
    %v648 = vxor.u32 %v638, 2147483648
    %v649 = vsel %vm647, %v648, %v639
    %v650 = vsel %vm643, %v646, %v649
    %v651 = vsel %vm640, nan, %v650
    %v652 = vld [vmem:[%s5] sm:$0xff]
    %v653 = vld [vmem:[%s5 + $0x8] sm:$0xf]
    %v654 = vld [vmem:[%s6] sm:$0xff]
    %v655 = vld [vmem:[%s6 + $0x8] sm:$0xf]
    %657 = vset.pattern.permute.xlu0 0
    %658 = vperm.xlu0 %657, %v652
    %v659 = vpop.permute.xlu0 %658
    %662 = vset.pattern.permute.xlu0 0
    %663 = vperm.xlu0 %662, %v653
    %v664 = vpop.permute.xlu0 %663
    %v666 = vlaneseq
    %v667 = vshrl.u32 %v666, 7
    %v668 = vsub.s32 0, %v667
    %v669 = vrot.slane %v547, %v668
    %v670 = vmul.f32 %v659, %v669
    %v671 = vmul.f32 %v664, %v669
    %673 = vset.pattern.permute.xlu0 0
    %674 = vperm.xlu0 %673, %v654
    %v675 = vpop.permute.xlu0 %674
    %678 = vset.pattern.permute.xlu0 0
    %679 = vperm.xlu0 %678, %v655
    %v680 = vpop.permute.xlu0 %679
    %v682 = vadd.f32 %v670, %v675
    %v683 = vadd.f32 %v671, %v680
    %684 = vset.pattern.permute.xlu0 1
    %685 = vperm.xlu0 %684, %v652
    %v686 = vpop.permute.xlu0 %685
    %688 = vset.pattern.permute.xlu0 1
    %689 = vperm.xlu0 %688, %v653
    %v690 = vpop.permute.xlu0 %689
    %v692 = vlaneseq
    %v693 = vshrl.u32 %v692, 7
    %v694 = vsub.s32 1, %v693
    %v695 = vrot.slane %v547, %v694
    %v696 = vmul.f32 %v686, %v695
    %v697 = vmul.f32 %v690, %v695
    %v698 = vadd.f32 %v682, %v696
    %v699 = vadd.f32 %v683, %v697
    %700 = vset.pattern.permute.xlu0 2
    %701 = vperm.xlu0 %700, %v652
    %v702 = vpop.permute.xlu0 %701
    %704 = vset.pattern.permute.xlu0 2
    %705 = vperm.xlu0 %704, %v653
    %v706 = vpop.permute.xlu0 %705
    %v708 = vlaneseq
    %v709 = vshrl.u32 %v708, 7
    %v710 = vsub.s32 2, %v709
    %v711 = vrot.slane %v547, %v710
    %v712 = vmul.f32 %v702, %v711
    %v713 = vmul.f32 %v706, %v711
    %v714 = vadd.f32 %v698, %v712
    %v715 = vadd.f32 %v699, %v713
    %716 = vset.pattern.permute.xlu0 3
    %717 = vperm.xlu0 %716, %v652
    %v718 = vpop.permute.xlu0 %717
    %720 = vset.pattern.permute.xlu0 3
    %721 = vperm.xlu0 %720, %v653
    %v722 = vpop.permute.xlu0 %721
    %v724 = vlaneseq
    %v725 = vshrl.u32 %v724, 7
    %v726 = vsub.s32 3, %v725
    %v727 = vrot.slane %v547, %v726
    %v728 = vmul.f32 %v718, %v727
    %v729 = vmul.f32 %v722, %v727
    %v730 = vadd.f32 %v714, %v728
    %v731 = vadd.f32 %v715, %v729
    %732 = vset.pattern.permute.xlu0 4
    %733 = vperm.xlu0 %732, %v652
    %v734 = vpop.permute.xlu0 %733
    %736 = vset.pattern.permute.xlu0 4
    %737 = vperm.xlu0 %736, %v653
    %v738 = vpop.permute.xlu0 %737
    %v740 = vlaneseq
    %v741 = vshrl.u32 %v740, 7
    %v742 = vsub.s32 4, %v741
    %v743 = vrot.slane %v547, %v742
    %v744 = vmul.f32 %v734, %v743
    %v745 = vmul.f32 %v738, %v743
    %v746 = vadd.f32 %v730, %v744
    %v747 = vadd.f32 %v731, %v745
    %748 = vset.pattern.permute.xlu0 5
    %749 = vperm.xlu0 %748, %v652
    %v750 = vpop.permute.xlu0 %749
    %752 = vset.pattern.permute.xlu0 5
    %753 = vperm.xlu0 %752, %v653
    %v754 = vpop.permute.xlu0 %753
    %v756 = vlaneseq
    %v757 = vshrl.u32 %v756, 7
    %v758 = vsub.s32 5, %v757
    %v759 = vrot.slane %v547, %v758
    %v760 = vmul.f32 %v750, %v759
    %v761 = vmul.f32 %v754, %v759
    %v762 = vadd.f32 %v746, %v760
    %v763 = vadd.f32 %v747, %v761
    %764 = vset.pattern.permute.xlu0 6
    %765 = vperm.xlu0 %764, %v652
    %v766 = vpop.permute.xlu0 %765
    %768 = vset.pattern.permute.xlu0 6
    %769 = vperm.xlu0 %768, %v653
    %v770 = vpop.permute.xlu0 %769
    %v772 = vlaneseq
    %v773 = vshrl.u32 %v772, 7
    %v774 = vsub.s32 6, %v773
    %v775 = vrot.slane %v547, %v774
    %v776 = vmul.f32 %v766, %v775
    %v777 = vmul.f32 %v770, %v775
    %v778 = vadd.f32 %v762, %v776
    %v779 = vadd.f32 %v763, %v777
    %780 = vset.pattern.permute.xlu0 7
    %781 = vperm.xlu0 %780, %v652
    %v782 = vpop.permute.xlu0 %781
    %784 = vset.pattern.permute.xlu0 7
    %785 = vperm.xlu0 %784, %v653
    %v786 = vpop.permute.xlu0 %785
    %v788 = vlaneseq
    %v789 = vshrl.u32 %v788, 7
    %v790 = vsub.s32 7, %v789
    %v791 = vrot.slane %v547, %v790
    %v792 = vmul.f32 %v782, %v791
    %v793 = vmul.f32 %v786, %v791
    %v794 = vadd.f32 %v778, %v792
    %v795 = vadd.f32 %v779, %v793
    %796 = vset.pattern.permute.xlu0 8
    %797 = vperm.xlu0 %796, %v652
    %v798 = vpop.permute.xlu0 %797
    %800 = vset.pattern.permute.xlu0 8
    %801 = vperm.xlu0 %800, %v653
    %v802 = vpop.permute.xlu0 %801
    %v804 = vlaneseq
    %v805 = vshrl.u32 %v804, 7
    %v806 = vsub.s32 0, %v805
    %v807 = vrot.slane %v651, %v806
    %v808 = vmul.f32 %v798, %v807
    %v809 = vmul.f32 %v802, %v807
    %v810 = vadd.f32 %v794, %v808
    %v811 = vadd.f32 %v795, %v809
    %812 = vst [vmem:[#allocation2] sm:$0xff] %v810
    %813 = vst [vmem:[#allocation2 + $0x8] sm:$0xf] %v811
    // Predicated region
    $region30: #{tpu_custom_call.1} parent=1 // pred_check
      _
    $region31: #{tpu_custom_call.1} parent=1 // pred_check_branch
      %815 = sbr.rel (0) target = $region33
    $region32: #{tpu_custom_call.1} parent=1 // pred_region
      %s817 = ssub.s32 256, 256
      %818 = vsyncadd [#allocation3], %s817
      %s819 = sshll.u32 [#allocation2], 4
      %s820 = int_to_ptr.vmem [resolvable:$true] %s819
      %825 = dma.vmem_to_hbm [thread:$0]  %s820, 256, %s7, [#allocation3], 128, 128, 8
    $region33: #{tpu_custom_call.1} parent=1 // pred_fallthru
      _
    // Predicated region
    $region34: #{tpu_custom_call.1} parent=1 // pred_check
      _
    $region35: #{tpu_custom_call.1} parent=1 // pred_check_branch
      %827 = sbr.rel (0) target = $region37
    $region36: #{tpu_custom_call.1} parent=1 // pred_region
      %828 = dma.done [#allocation3], 256
    $region37: #{tpu_custom_call.1} parent=1 // pred_fallthru
      _
    %829 = vsyncpa [#allocation3], 1

</llo_original>
